<compile_context>
chip_gen: v5e
topology: v5e:2x2
jax: 0.10.0
libtpu: 0.0.40
codegen_flags: <defaults>
</compile_context>

<pallas_src>
from functools import partial

import jax
import jax.numpy as jnp
import numpy as np
from jax.experimental import pallas as pl
from jax.experimental.pallas import tpu as pltpu


# ---------------------------------------------------------------------------
# Kernel
# ---------------------------------------------------------------------------
def _h_swish_kernel(x_ref, o_ref):
    """Elementwise hard-swish on one (th, lane) tile.

    h_swish(x) = x * relu6(x + 3) / 6 == x * clip(x + 3, 0, 6) * (1/6)
    Pure VPU ops — nothing lands on the EUP/XLU/MXU.
    """
    x = x_ref[...].astype(jnp.float32)
    inner = jnp.minimum(jnp.maximum(x + 3.0, 0.0), 6.0)
    o_ref[...] = (x * inner * (1.0 / 6.0)).astype(o_ref.dtype)


def _h_swish_jnp(x):
    """Fused XLA path for tiny or non-128-divisible tensors."""
    xf = x.astype(jnp.float32)
    y = xf * jnp.minimum(jnp.maximum(xf + 3.0, 0.0), 6.0) * (1.0 / 6.0)
    return y.astype(x.dtype)


# ---------------------------------------------------------------------------
# Layout helpers
# ---------------------------------------------------------------------------
_LANE_CANDIDATES = (1024, 512, 256, 128)
# ~2 MiB per pipelined buffer -> <= 8 MiB total with double-buffered in + out.
# Safe under v5e's 16 MiB scoped-VMEM default; plenty of headroom on v6e/v7x.
_TARGET_TILE_BYTES = 2 * 1024 * 1024
# Below this total byte size a single fused XLA elementwise op beats the fixed
# pallas_call launch/pipeline overhead.
_MIN_PALLAS_BYTES = 256 * 1024


def _sublane(itemsize):
    # f32/i32 -> 8, bf16/f16 -> 16, int8/fp8 -> 32 rows per packed vreg tile.
    return max(8, 32 // int(itemsize))


def _round_up(x, m):
    return -(-x // m) * m


def _choose_lane(n, sublane):
    """Pick a lane width (multiple of 128) that exactly divides n.

    Preference order: a lane that also keeps rows a sublane multiple (no
    masking anywhere), then any lane that divides n (masked last block only).
    Returns None if n is not a multiple of 128 -> caller uses the jnp path.
    """
    for lane in _LANE_CANDIDATES:
        if n % lane == 0 and (n // lane) % sublane == 0:
            return lane
    for lane in _LANE_CANDIDATES:
        if n % lane == 0:
            return lane
    return None


def _choose_row_tile(rows, lane, sublane, itemsize):
    """Rows per block: ~2 MiB/buffer, sublane-aligned, >=2 grid steps if able."""
    target = (_TARGET_TILE_BYTES // (lane * itemsize)) // sublane * sublane
    target = max(target, sublane)
    th = min(target, _round_up(rows, sublane))
    # Keep at least 2 grid steps when there is enough work so the v7x megacore
    # can shard the "parallel" axis across both TensorCores.
    if rows >= 2 * sublane:
        cap = max(sublane, (rows // 2) // sublane * sublane)
        th = min(th, cap)
    return max(th, sublane)


# ---------------------------------------------------------------------------
# Jitted implementation (reshape + pallas_call + reshape compile as one program)
# ---------------------------------------------------------------------------
@partial(jax.jit, static_argnames=("use_pallas",))
def _h_swish_impl(x, use_pallas):
    if not use_pallas:
        return _h_swish_jnp(x)

    shape = x.shape
    dtype = x.dtype
    n = int(np.prod(shape)) if len(shape) else 1
    itemsize = int(np.dtype(dtype).itemsize)
    sub = _sublane(itemsize)

    lane = _choose_lane(n, sub)
    if lane is None:
        # n not a multiple of 128: a lane-dense slab would require a pad +
        # slice (two extra HBM passes); the fused XLA path is already optimal.
        return _h_swish_jnp(x)

    rows = n // lane
    th = _choose_row_tile(rows, lane, sub, itemsize)
    grid = (pl.cdiv(rows, th),)  # partial last block is masked by Pallas

    x2d = x.reshape(rows, lane)
    out2d = pl.pallas_call(
        _h_swish_kernel,
        out_shape=jax.ShapeDtypeStruct((rows, lane), dtype),
        grid=grid,
        in_specs=[pl.BlockSpec((th, lane), lambda i: (i, 0))],
        out_specs=pl.BlockSpec((th, lane), lambda i: (i, 0)),
        compiler_params=pltpu.CompilerParams(
            dimension_semantics=("parallel",),
        ),
    )(x2d)
    return out2d.reshape(shape)


# ---------------------------------------------------------------------------
# Public wrapper (matches PyTorch h_swish.forward semantics, any shape/dtype)
# ---------------------------------------------------------------------------
def h_swish(x, *, use_pallas=None):
    if use_pallas is None:
        n = int(np.prod(x.shape)) if len(x.shape) else 1
        itemsize = int(np.dtype(x.dtype).itemsize)
        use_pallas = (n * itemsize >= _MIN_PALLAS_BYTES) and (n % 128 == 0)
    return _h_swish_impl(x, use_pallas=bool(use_pallas))


# ---------------------------------------------------------------------------
# Pure-JAX reference (mirrors the PyTorch module: relu6(x + 3) / 6 * x)
# ---------------------------------------------------------------------------
def _reference(x):
    return x * jnp.clip(x + 3.0, 0.0, 6.0) / 6.0


if __name__ == "__main__":
    key = jax.random.PRNGKey(0)
    k1, k2, k3 = jax.random.split(key, 3)

    # (1) Canonical small NCHW activation, forced through the Pallas path.
    x1 = jax.random.normal(k1, (2, 4, 16, 16), dtype=jnp.float32) * 3.0
    y1 = jax.block_until_ready(h_swish(x1, use_pallas=True))
    np.testing.assert_allclose(
        np.asarray(y1), np.asarray(_reference(x1)), atol=1e-6, rtol=1e-6
    )

    # (2) bf16 input exercises the dtype-aware (16, 128) sublane granularity.
    x2 = (jax.random.normal(k2, (2, 8, 16, 16), dtype=jnp.float32) * 3.0).astype(
        jnp.bfloat16
    )
    y2 = jax.block_until_ready(h_swish(x2, use_pallas=True))
    ref2 = _reference(x2.astype(jnp.float32)).astype(jnp.bfloat16)
    np.testing.assert_allclose(
        np.asarray(y2.astype(jnp.float32)),
        np.asarray(ref2.astype(jnp.float32)),
        atol=2e-2,
        rtol=2e-2,
    )

    # (3) Auto path: small, non-128-divisible tensor -> fused jnp fast path.
    x3 = jax.random.normal(k3, (3, 5, 7, 9), dtype=jnp.float32) * 3.0
    y3 = jax.block_until_ready(h_swish(x3))
    np.testing.assert_allclose(
        np.asarray(y3), np.asarray(_reference(x3)), atol=1e-6, rtol=1e-6
    )

    print("KERNEL_OK")
</pallas_src>

<mosaic_0001>
module attributes {stable_mosaic.version = 11 : i64} {
  func.func @_h_swish_kernel(%arg0: i32, %arg1: memref<8x256xf32, #tpu.memory_space<vmem>>, %arg2: memref<8x256xf32, #tpu.memory_space<vmem>>) attributes {dimension_semantics = [#tpu.dimension_semantics<parallel>], iteration_bounds = array<i64: 1>, scalar_prefetch = 0 : i64, scratch_operands = 0 : i64, tpu.core_type = #tpu.core_type<tc>, window_params = [{transform_indices = @transform_0, window_bounds = array<i64: 8, 256>}, {transform_indices = @transform_1, window_bounds = array<i64: 8, 256>}]} {
    %c0 = arith.constant 0 : index
    %c0_0 = arith.constant 0 : index
    %0 = vector.load %arg1[%c0, %c0_0] : memref<8x256xf32, #tpu.memory_space<vmem>>, vector<8x256xf32>
    %cst = arith.constant 3.000000e+00 : f32
    %1 = vector.broadcast %cst : f32 to vector<8x256xf32>
    %2 = arith.addf %0, %1 : vector<8x256xf32>
    %cst_1 = arith.constant 0.000000e+00 : f32
    %3 = vector.broadcast %cst_1 : f32 to vector<8x256xf32>
    %4 = arith.maximumf %2, %3 : vector<8x256xf32>
    %cst_2 = arith.constant 6.000000e+00 : f32
    %5 = vector.broadcast %cst_2 : f32 to vector<8x256xf32>
    %6 = arith.minimumf %4, %5 : vector<8x256xf32>
    %7 = arith.mulf %0, %6 : vector<8x256xf32>
    %cst_3 = arith.constant 0.166666672 : f32
    %8 = vector.broadcast %cst_3 : f32 to vector<8x256xf32>
    %9 = arith.mulf %7, %8 : vector<8x256xf32>
    %c0_4 = arith.constant 0 : index
    %c0_5 = arith.constant 0 : index
    %10 = vector.load %arg2[%c0_4, %c0_5] : memref<8x256xf32, #tpu.memory_space<vmem>>, vector<8x256xf32>
    tpu.vector_store %arg2[%c0_4, %c0_5], %9 {strides = array<i32>} : memref<8x256xf32, #tpu.memory_space<vmem>>, vector<8x256xf32>,
    return
  }
  func.func @transform_0(%arg0: i32) -> (i32, i32) {
    %c0_i32 = arith.constant 0 : i32
    %c0_i32_0 = arith.constant 0 : i32
    return %arg0, %c0_i32 : i32, i32
  }
  func.func @transform_1(%arg0: i32) -> (i32, i32) {
    %c0_i32 = arith.constant 0 : i32
    %c0_i32_0 = arith.constant 0 : i32
    return %arg0, %c0_i32 : i32, i32
  }
}

</mosaic_0001>

<llo_original>
// kernel: _h_swish_impl.1
$region0: #{_h_swish_impl.1}
  #allocation0 [shape = 'u32[]', space=smem, size = 0x4, offset = 0x4, fixed_abs, tag = 'smem constant byte address 0x4 - core index']
  #allocation1 [shape = 'u32[72,128]{1,0:T(1,128)}', space=vmem, size = 0x9000, scoped, tag = 'internal scratch']
  %s0 = inlined_call_operand.vmem [shape: f32[8,256], index: 0, kind: input, shape index: {}]
  %s1 = inlined_call_operand.vmem [shape: f32[8,256], index: 1, kind: output, shape index: {}]
  %s2 = sld [smem:[#allocation0]]
  $region14: #{_h_swish_impl.1} parent=0
    _
  %s4 = ssub.s32 1, %s2
  %s5 = scalar_select 0, %s4, %s2
  // Predicated region
  $region2: #{_h_swish_impl.1} parent=0 // pred_check
    _
  $region3: #{_h_swish_impl.1} parent=0 // pred_check_branch
    %7 = sbr.rel (0) target = $region5
  $region4: #{_h_swish_impl.1} parent=0 // pred_region
    _
  $region5: #{_h_swish_impl.1} parent=0 // pred_fallthru
    _
  %v8 = vld [vmem:[%s0] sm:$0xff]
  %v9 = vld [vmem:[%s0 + $0x8] sm:$0xff]
  %v10 = vadd.f32 %v8, 3.0
  %v11 = vadd.f32 %v9, 3.0
  %v12 = vmax.f32 %v10, 0.0
  %v13 = vmax.f32 %v11, 0.0
  %v14 = vmin.f32 %v12, 6.0
  %v15 = vmin.f32 %v13, 6.0
  %v16 = vmul.f32 %v8, %v14
  %v17 = vmul.f32 %v9, %v15
  %v18 = vmul.f32 %v16, 0.16666667
  %v19 = vmul.f32 %v17, 0.16666667
  %20 = vst [vmem:[%s1] sm:$0xff] %v18
  %21 = vst [vmem:[%s1 + $0x8] sm:$0xff] %v19
  // Predicated region
  $region6: #{_h_swish_impl.1} parent=0 // pred_check
    _
  $region7: #{_h_swish_impl.1} parent=0 // pred_check_branch
    %23 = sbr.rel (0) target = $region9
  $region8: #{_h_swish_impl.1} parent=0 // pred_region
    _
  $region9: #{_h_swish_impl.1} parent=0 // pred_fallthru
    _
  // Predicated region
  $region10: #{_h_swish_impl.1} parent=0 // pred_check
    _
  $region11: #{_h_swish_impl.1} parent=0 // pred_check_branch
    %25 = sbr.rel (0) target = $region13
  $region12: #{_h_swish_impl.1} parent=0 // pred_region
    _
  $region13: #{_h_swish_impl.1} parent=0 // pred_fallthru
    _

</llo_original>
